<compile_context>
chip_gen: v5e
topology: v5e:2x2
jax: 0.10.0
libtpu: 0.0.40
codegen_flags: <defaults>
</compile_context>

<pallas_src>
import jax
import jax.numpy as jnp
from jax.experimental import pallas as pl
from jax.experimental.pallas import tpu as pltpu


def attn_kernel(enc_ref, dec_ref, mask_ref, w_enc_ref, w_dec_ref, params_ref,
                out_ref):
    # enc_ref  : (Bt, L, 2H) f32/bf16 (input dtype; bf16-cast in-register)
    # dec_ref  : (Bt, H)     f32/bf16
    # mask_ref : (Bt, L)     int32 (nonzero == masked)
    # w_enc_ref: (2H, A) f32   w_dec_ref: (H, A) f32
    # params_ref: (4, A) f32  rows = [b_enc, b_dec, w_att_row, b_att]
    # out_ref  : (Bt, A) f32
    Bt, L, twoH = enc_ref.shape
    A = w_enc_ref.shape[1]

    params = params_ref[...]                       # (4, A) f32
    b_enc = params[0:1, :]                         # (1, A)
    b_dec = params[1:2, :]                         # (1, A)
    w_att = params[2:3, :]                         # (1, A)  attention row vector
    b_att = params[3:4, 0:1]                       # (1, 1)

    # encoder_att = lin2att_enc(enc_output): one big bf16 MXU matmul, f32 acc.
    # The reshape is a no-copy relayout because the wrapper guarantees L % 8 == 0.
    enc = enc_ref[...].reshape(Bt * L, twoH).astype(jnp.bfloat16)
    w_enc = w_enc_ref[...].astype(jnp.bfloat16)
    enc_att = jnp.dot(enc, w_enc,
                      preferred_element_type=jnp.float32) + b_enc   # (Bt*L, A) f32
    enc_att = enc_att.reshape(Bt, L, A)                             # (Bt, L, A)

    # decoder_att = lin2att_dec(decoder_hidden): bf16 MXU matmul, f32 acc.
    dec_att = jnp.dot(dec_ref[...].astype(jnp.bfloat16),
                      w_dec_ref[...].astype(jnp.bfloat16),
                      preferred_element_type=jnp.float32) + b_dec   # (Bt, A)

    # attention(tanh(enc_att + dec_att.unsqueeze(1)))
    t = jnp.tanh(enc_att + dec_att[:, None, :])                     # (Bt, L, A)

    # N=1 linear done on the VPU (multiply) + XLU (lane reduce over A).
    scores = jnp.sum(t * w_att[None, :, :], axis=-1) + b_att        # (Bt, L)

    # masked_fill_(masks, -inf)  — matches torch (all-masked row -> NaN).
    scores = jnp.where(mask_ref[...] != 0, -jnp.inf, scores)

    # softmax over the sequence axis.  (Plain divide: kernel is DMA-bound;
    # pl.reciprocal(approx=True) is an option if it ever becomes VALU-bound.)
    m = jnp.max(scores, axis=-1, keepdims=True)
    e = jnp.exp(scores - m)
    att_w = e / jnp.sum(e, axis=-1, keepdims=True)                  # (Bt, L)

    # context = (encoder_att * att_weights).sum(dim=1)
    ctx = jnp.sum(enc_att * att_w[:, :, None], axis=1)              # (Bt, A)
    out_ref[...] = ctx.astype(out_ref.dtype)


def _choose_block(B, L, twoH, A, *, target_enc_bytes=4 << 20,
                  vmem_work_bytes=28 << 20):
    """Pick (Bt, padded_B).

    Bt targets ~4 MiB enc DMA blocks (big blocks -> near HBM roofline, per-step
    overhead amortized) while keeping the per-step VMEM working set (dbl-buffered
    enc + the two f32 (Bt,L,A) temporaries + output) bounded.  Bt is a multiple
    of 8 (or the full batch) so every 2-D block is sublane-aligned."""
    enc_row = L * twoH * 4                        # f32 bytes per batch row
    work_row = (2 * enc_row + L * twoH * 2        # dbl-buf enc + bf16 copy
                + 2 * L * A * 4                   # enc_att + tanh temporary
                + 2 * A * 4 + L * 4 + 64)         # out dbl-buf, mask, slack
    cap = int(min(1024, target_enc_bytes // enc_row, vmem_work_bytes // work_row))
    cap = max(8, (cap // 8) * 8)
    if B <= cap:
        return B, B                               # whole batch, single grid step
    best = None
    best_even = None
    for bt in range(cap, 7, -8):                  # multiples of 8 only
        if B % bt == 0:
            if best is None:
                best = bt
            if (B // bt) % 2 == 0:                # even #steps: balances v7x's 2 TCs
                best_even = bt
                break
    if best_even is not None and 2 * best_even >= best:
        return best_even, B
    if best is not None and best >= max(8, cap // 4):
        return best, B
    # Awkward B (no good multiple-of-8 divisor): pad the batch instead of
    # falling back to tiny, DMA-inefficient blocks.
    bt = cap
    return bt, pl.cdiv(B, bt) * bt


def attn_pallas(enc_output, decoder_hidden, masks,
                w_enc, b_enc, w_dec, b_dec, w_att, b_att, *, block_b=None):
    B, L, twoH = enc_output.shape
    H = decoder_hidden.shape[-1]
    A = w_enc.shape[-1]

    # Keep the dominant operand in its incoming dtype (f32 or bf16): a
    # wrapper-side bf16 cast would be a separate, un-fused XLA pass (extra HBM
    # traffic over the biggest tensor).  The bf16 rounding for the MXU happens
    # in-register inside the kernel.
    enc = enc_output
    if enc.dtype not in (jnp.float32, jnp.bfloat16):
        enc = enc.astype(jnp.float32)
    dec = jnp.asarray(decoder_hidden).reshape(B, H)
    if dec.dtype not in (jnp.float32, jnp.bfloat16):
        dec = dec.astype(jnp.float32)
    masks_i32 = jnp.asarray(masks).reshape(B, L).astype(jnp.int32)

    # Guarantee L % 8 == 0 so the in-kernel (Bt, L, 2H) -> (Bt*L, 2H) collapse
    # is sublane-tile aligned (no VMEM copy of the dominant operand).
    Lp = ((L + 7) // 8) * 8
    if Lp != L:
        # TODO(synk): this pad is one extra HBM pass over enc_output; if
        # production L is not a multiple of 8, pad it upstream instead.
        enc = jnp.pad(enc, ((0, 0), (0, Lp - L), (0, 0)))
        masks_i32 = jnp.pad(masks_i32, ((0, 0), (0, Lp - L)), constant_values=1)

    if block_b is not None:
        Bt = block_b
        Bp = pl.cdiv(B, Bt) * Bt
    else:
        Bt, Bp = _choose_block(B, Lp, twoH, A)
    if Bp != B:
        pad = Bp - B
        enc = jnp.pad(enc, ((0, pad), (0, 0), (0, 0)))
        dec = jnp.pad(dec, ((0, pad), (0, 0)))
        masks_i32 = jnp.pad(masks_i32, ((0, pad), (0, 0)))   # unmasked -> no NaN

    # Consolidate the small vectors into a single (4, A) f32 tile.
    params = jnp.stack([
        jnp.asarray(b_enc, jnp.float32).reshape(A),
        jnp.asarray(b_dec, jnp.float32).reshape(A),
        jnp.asarray(w_att, jnp.float32).reshape(A),          # (A, 1) column -> row
        jnp.full((A,), jnp.asarray(b_att, jnp.float32).reshape(())),
    ], axis=0)                                                # (4, A)

    w_enc_f32 = jnp.asarray(w_enc, jnp.float32)
    w_dec_f32 = jnp.asarray(w_dec, jnp.float32)

    # Explicit VMEM budget: dbl-buffered enc block + in-register bf16 copy +
    # the two f32 (Bt, L, A) temporaries + dbl-buffered out + small operands.
    enc_isz = jnp.dtype(enc.dtype).itemsize
    dec_isz = jnp.dtype(dec.dtype).itemsize
    work = (2 * Bt * Lp * twoH * enc_isz
            + Bt * Lp * twoH * 2
            + 2 * Bt * Lp * A * 4
            + 2 * Bt * A * 4
            + 2 * (Bt * H * dec_isz + Bt * Lp * 4)
            + (twoH * 4 + H * 4 + 4 * 4) * A
            + (1 << 20))                                      # compiler slack
    vmem_limit = int(min(48 << 20, max(32 << 20, 2 * work)))  # <= v7x 64 MiB/TC

    out = pl.pallas_call(
        attn_kernel,
        out_shape=jax.ShapeDtypeStruct((Bp, A), jnp.float32),
        grid_spec=pltpu.PrefetchScalarGridSpec(
            num_scalar_prefetch=0,
            grid=(Bp // Bt,),
            in_specs=[
                pl.BlockSpec((Bt, Lp, twoH), lambda b: (b, 0, 0)),  # enc
                pl.BlockSpec((Bt, H),        lambda b: (b, 0)),     # dec
                pl.BlockSpec((Bt, Lp),       lambda b: (b, 0)),     # mask (i32)
                pl.BlockSpec((twoH, A),      lambda b: (0, 0)),     # W_enc
                pl.BlockSpec((H, A),         lambda b: (0, 0)),     # W_dec
                pl.BlockSpec((4, A),         lambda b: (0, 0)),     # params
            ],
            out_specs=pl.BlockSpec((Bt, A), lambda b: (b, 0)),
        ),
        compiler_params=pltpu.CompilerParams(
            dimension_semantics=("parallel",),
            vmem_limit_bytes=vmem_limit),
    )(enc, dec, masks_i32, w_enc_f32, w_dec_f32, params)

    return out[:B]


def attn_ref(enc_output, decoder_hidden, masks,
             w_enc, b_enc, w_dec, b_dec, w_att, b_att,
             *, match_kernel_precision=True):
    """Pure-JAX reference.  match_kernel_precision=True mirrors the kernel's
    bf16 rounding of the matmul operands (f32 accumulate / post-math)."""
    if match_kernel_precision:
        r = lambda x: jnp.asarray(x, jnp.float32).astype(jnp.bfloat16).astype(jnp.float32)
    else:
        r = lambda x: jnp.asarray(x, jnp.float32)
    enc = r(enc_output)
    we = r(w_enc)
    dec = r(decoder_hidden)
    wd = r(w_dec)
    enc_att = enc @ we + jnp.asarray(b_enc, jnp.float32)              # (B, L, A)
    dec_att = dec @ wd + jnp.asarray(b_dec, jnp.float32)              # (B, A)
    scores = (jnp.tanh(enc_att + dec_att[:, None, :])
              @ jnp.asarray(w_att, jnp.float32).reshape(-1, 1)
              + jnp.asarray(b_att, jnp.float32))                      # (B, L, 1)
    scores = jnp.where(jnp.asarray(masks).reshape(scores.shape), -jnp.inf, scores)
    att_w = jax.nn.softmax(scores, axis=1)
    return jnp.sum(enc_att * att_w, axis=1)                           # (B, A)


if __name__ == "__main__":
    # Small shapes consistent with the module.
    B, L = 16, 8
    hidden_dim, attention_dim = 32, 32
    H, A = hidden_dim, attention_dim

    key = jax.random.PRNGKey(0)
    k_enc, k_dec, k_we, k_wd, k_wa, k_be, k_bd, k_ba = jax.random.split(key, 8)

    enc_output = jax.random.normal(k_enc, (B, L, 2 * H), jnp.float32)
    decoder_hidden = jax.random.normal(k_dec, (B, H), jnp.float32)

    # Padding-style mask (1 == masked); every row keeps >= 1 valid position so
    # the -inf softmax (torch-faithful) never produces NaN in this demo.
    valid_len = (jnp.arange(B) % L) + 1
    masks_bool = (jnp.arange(L)[None, :] >= valid_len[:, None]).reshape(B, L, 1)

    # Weights stored as [in, out] (transposed vs. nn.Linear's [out, in]);
    # nonzero biases so the bias path is exercised.
    w_enc = jax.random.uniform(k_we, (2 * H, A), jnp.float32, -0.1, 0.1)
    b_enc = jax.random.uniform(k_be, (A,), jnp.float32, -0.1, 0.1)
    w_dec = jax.random.uniform(k_wd, (H, A), jnp.float32, -0.1, 0.1)
    b_dec = jax.random.uniform(k_bd, (A,), jnp.float32, -0.1, 0.1)
    w_att = jax.random.uniform(k_wa, (A, 1), jnp.float32, -0.1, 0.1)
    b_att = jax.random.uniform(k_ba, (), jnp.float32, -0.1, 0.1)

    # Auto block (whole batch, single grid step at these tiny shapes).
    out = attn_pallas(enc_output, decoder_hidden, masks_bool,
                      w_enc, b_enc, w_dec, b_dec, w_att, b_att)
    out = jax.block_until_ready(out)
    assert out.shape == (B, A)

    # Also exercise the multi-step pipelined grid path (2 steps of Bt=8).
    out_blocked = attn_pallas(enc_output, decoder_hidden, masks_bool,
                              w_enc, b_enc, w_dec, b_dec, w_att, b_att,
                              block_b=8)
    out_blocked = jax.block_until_ready(out_blocked)
    assert jnp.allclose(out, out_blocked, atol=1e-5, rtol=1e-5), \
        "blocked grid path disagrees with single-step path"

    # Tight check against a precision-matched reference (same bf16 rounding).
    ref_bf16 = attn_ref(enc_output, decoder_hidden, masks_bool,
                        w_enc, b_enc, w_dec, b_dec, w_att, b_att,
                        match_kernel_precision=True)
    assert jnp.allclose(out, ref_bf16, atol=1e-4, rtol=1e-4), \
        "mismatch vs precision-matched reference"

    # Sanity check against the pure-f32 (torch-equivalent) reference at a
    # bf16-input tolerance.
    ref_f32 = attn_ref(enc_output, decoder_hidden, masks_bool,
                       w_enc, b_enc, w_dec, b_dec, w_att, b_att,
                       match_kernel_precision=False)
    assert jnp.allclose(out, ref_f32, atol=5e-2, rtol=5e-2), \
        "mismatch vs f32 reference beyond bf16 tolerance"

    print("KERNEL_OK")
</pallas_src>

<mosaic_0001>
module attributes {stable_mosaic.version = 11 : i64} {
  func.func @attn_kernel(%arg0: i32, %arg1: memref<16x8x64xf32, #tpu.memory_space<vmem>>, %arg2: memref<16x32xf32, #tpu.memory_space<vmem>>, %arg3: memref<16x8xi32, #tpu.memory_space<vmem>>, %arg4: memref<64x32xf32, #tpu.memory_space<vmem>>, %arg5: memref<32x32xf32, #tpu.memory_space<vmem>>, %arg6: memref<4x32xf32, #tpu.memory_space<vmem>>, %arg7: memref<16x32xf32, #tpu.memory_space<vmem>>) attributes {dimension_semantics = [#tpu.dimension_semantics<parallel>], iteration_bounds = array<i64: 1>, scalar_prefetch = 0 : i64, scratch_operands = 0 : i64, tpu.core_type = #tpu.core_type<tc>, window_params = [{transform_indices = @transform_0, window_bounds = array<i64: 16, 8, 64>}, {transform_indices = @transform_1, window_bounds = array<i64: 16, 32>}, {transform_indices = @transform_2, window_bounds = array<i64: 16, 8>}, {pipeline_mode = #tpu.pipeline_mode<synchronous>, transform_indices = @transform_3, window_bounds = array<i64: 64, 32>}, {pipeline_mode = #tpu.pipeline_mode<synchronous>, transform_indices = @transform_4, window_bounds = array<i64: 32, 32>}, {pipeline_mode = #tpu.pipeline_mode<synchronous>, transform_indices = @transform_5, window_bounds = array<i64: 4, 32>}, {transform_indices = @transform_6, window_bounds = array<i64: 16, 32>}]} {
    %c0 = arith.constant 0 : index
    %c0_0 = arith.constant 0 : index
    %0 = vector.load %arg6[%c0, %c0_0] : memref<4x32xf32, #tpu.memory_space<vmem>>, vector<4x32xf32>
    %1 = vector.extract_strided_slice %0 {offsets = [0, 0], sizes = [1, 32], strides = [1, 1]} : vector<4x32xf32> to vector<1x32xf32>
    %2 = vector.extract_strided_slice %0 {offsets = [1, 0], sizes = [1, 32], strides = [1, 1]} : vector<4x32xf32> to vector<1x32xf32>
    %3 = vector.extract_strided_slice %0 {offsets = [2, 0], sizes = [1, 32], strides = [1, 1]} : vector<4x32xf32> to vector<1x32xf32>
    %4 = vector.extract_strided_slice %0 {offsets = [3, 0], sizes = [1, 1], strides = [1, 1]} : vector<4x32xf32> to vector<1x1xf32>
    %c0_1 = arith.constant 0 : index
    %c0_2 = arith.constant 0 : index
    %c0_3 = arith.constant 0 : index
    %5 = vector.load %arg1[%c0_1, %c0_2, %c0_3] : memref<16x8x64xf32, #tpu.memory_space<vmem>>, vector<16x8x64xf32>
    %6 = vector.shape_cast %5 : vector<16x8x64xf32> to vector<128x64xf32>
    %7 = arith.truncf %6 : vector<128x64xf32> to vector<128x64xbf16>
    %c0_4 = arith.constant 0 : index
    %c0_5 = arith.constant 0 : index
    %8 = vector.load %arg4[%c0_4, %c0_5] : memref<64x32xf32, #tpu.memory_space<vmem>>, vector<64x32xf32>
    %9 = arith.truncf %8 : vector<64x32xf32> to vector<64x32xbf16>
    %cst = arith.constant dense<0.000000e+00> : vector<128x32xf32>
    %10 = tpu.matmul %7, %9, %cst {dimension_numbers = #tpu.dot_dimension_numbers<[1], [0], [0], [1], [0, 0, 1, 1], [], []>} : vector<128x64xbf16>, vector<64x32xbf16>, vector<128x32xf32> -> vector<128x32xf32>
    %11 = vector.broadcast %1 : vector<1x32xf32> to vector<128x32xf32>
    %12 = arith.addf %10, %11 : vector<128x32xf32>
    %13 = vector.shape_cast %12 : vector<128x32xf32> to vector<16x8x32xf32>
    %c0_6 = arith.constant 0 : index
    %c0_7 = arith.constant 0 : index
    %14 = vector.load %arg2[%c0_6, %c0_7] : memref<16x32xf32, #tpu.memory_space<vmem>>, vector<16x32xf32>
    %15 = arith.truncf %14 : vector<16x32xf32> to vector<16x32xbf16>
    %c0_8 = arith.constant 0 : index
    %c0_9 = arith.constant 0 : index
    %16 = vector.load %arg5[%c0_8, %c0_9] : memref<32x32xf32, #tpu.memory_space<vmem>>, vector<32x32xf32>
    %17 = arith.truncf %16 : vector<32x32xf32> to vector<32x32xbf16>
    %cst_10 = arith.constant dense<0.000000e+00> : vector<16x32xf32>
    %18 = tpu.matmul %15, %17, %cst_10 {dimension_numbers = #tpu.dot_dimension_numbers<[1], [0], [0], [1], [0, 0, 1, 1], [], []>} : vector<16x32xbf16>, vector<32x32xbf16>, vector<16x32xf32> -> vector<16x32xf32>
    %19 = vector.broadcast %2 : vector<1x32xf32> to vector<16x32xf32>
    %20 = arith.addf %18, %19 : vector<16x32xf32>
    %21 = vector.shape_cast %20 : vector<16x32xf32> to vector<16x1x32xf32>
    %22 = vector.broadcast %21 : vector<16x1x32xf32> to vector<16x8x32xf32>
    %23 = arith.addf %13, %22 : vector<16x8x32xf32>
    %24 = math.tanh %23 : vector<16x8x32xf32>
    %25 = vector.shape_cast %3 : vector<1x32xf32> to vector<1x1x32xf32>
    %26 = vector.broadcast %25 : vector<1x1x32xf32> to vector<16x8x32xf32>
    %27 = arith.mulf %24, %26 : vector<16x8x32xf32>
    %cst_11 = arith.constant dense<0.000000e+00> : vector<16x8xf32>
    %28 = vector.multi_reduction <add>, %27, %cst_11 [2] : vector<16x8x32xf32> to vector<16x8xf32>
    %29 = vector.broadcast %4 : vector<1x1xf32> to vector<16x8xf32>
    %30 = arith.addf %28, %29 : vector<16x8xf32>
    %c0_12 = arith.constant 0 : index
    %c0_13 = arith.constant 0 : index
    %31 = vector.load %arg3[%c0_12, %c0_13] : memref<16x8xi32, #tpu.memory_space<vmem>>, vector<16x8xi32>
    %c0_i32 = arith.constant 0 : i32
    %32 = vector.broadcast %c0_i32 : i32 to vector<16x8xi32>
    %33 = arith.cmpi ne, %31, %32 : vector<16x8xi32>
    %cst_14 = arith.constant 0xFF800000 : f32
    %34 = vector.broadcast %cst_14 : f32 to vector<16x8xf32>
    %35 = arith.select %33, %34, %30 : vector<16x8xi1>, vector<16x8xf32>
    %cst_15 = arith.constant dense<0xFF800000> : vector<16xf32>
    %36 = vector.multi_reduction <maximumf>, %35, %cst_15 [1] : vector<16x8xf32> to vector<16xf32>
    %37 = vector.shape_cast %36 : vector<16xf32> to vector<16x1xf32>
    %38 = vector.broadcast %37 : vector<16x1xf32> to vector<16x8xf32>
    %39 = arith.subf %35, %38 : vector<16x8xf32>
    %40 = math.exp %39 : vector<16x8xf32>
    %cst_16 = arith.constant dense<0.000000e+00> : vector<16xf32>
    %41 = vector.multi_reduction <add>, %40, %cst_16 [1] : vector<16x8xf32> to vector<16xf32>
    %42 = vector.shape_cast %41 : vector<16xf32> to vector<16x1xf32>
    %43 = vector.broadcast %42 : vector<16x1xf32> to vector<16x8xf32>
    %44 = arith.divf %40, %43 : vector<16x8xf32>
    %45 = vector.shape_cast %44 : vector<16x8xf32> to vector<16x8x1xf32>
    %46 = vector.broadcast %45 : vector<16x8x1xf32> to vector<16x8x32xf32>
    %47 = arith.mulf %13, %46 : vector<16x8x32xf32>
    %cst_17 = arith.constant dense<0.000000e+00> : vector<16x32xf32>
    %48 = vector.multi_reduction <add>, %47, %cst_17 [1] : vector<16x8x32xf32> to vector<16x32xf32>
    %c0_18 = arith.constant 0 : index
    %c0_19 = arith.constant 0 : index
    %49 = vector.load %arg7[%c0_18, %c0_19] : memref<16x32xf32, #tpu.memory_space<vmem>>, vector<16x32xf32>
    tpu.vector_store %arg7[%c0_18, %c0_19], %48 {strides = array<i32>} : memref<16x32xf32, #tpu.memory_space<vmem>>, vector<16x32xf32>,
    return
  }
  func.func @transform_0(%arg0: i32) -> (i32, i32, i32) {
    %c0_i32 = arith.constant 0 : i32
    %c0_i32_0 = arith.constant 0 : i32
    %c0_i32_1 = arith.constant 0 : i32
    return %arg0, %c0_i32, %c0_i32_0 : i32, i32, i32
  }
  func.func @transform_1(%arg0: i32) -> (i32, i32) {
    %c0_i32 = arith.constant 0 : i32
    %c0_i32_0 = arith.constant 0 : i32
    return %arg0, %c0_i32 : i32, i32
  }
  func.func @transform_2(%arg0: i32) -> (i32, i32) {
    %c0_i32 = arith.constant 0 : i32
    %c0_i32_0 = arith.constant 0 : i32
    return %arg0, %c0_i32 : i32, i32
  }
  func.func @transform_3(%arg0: i32) -> (i32, i32) {
    %c0_i32 = arith.constant 0 : i32
    %c0_i32_0 = arith.constant 0 : i32
    %c0_i32_1 = arith.constant 0 : i32
    return %c0_i32, %c0_i32_0 : i32, i32
  }
  func.func @transform_4(%arg0: i32) -> (i32, i32) {
    %c0_i32 = arith.constant 0 : i32
    %c0_i32_0 = arith.constant 0 : i32
    %c0_i32_1 = arith.constant 0 : i32
    return %c0_i32, %c0_i32_0 : i32, i32
  }
  func.func @transform_5(%arg0: i32) -> (i32, i32) {
    %c0_i32 = arith.constant 0 : i32
    %c0_i32_0 = arith.constant 0 : i32
    %c0_i32_1 = arith.constant 0 : i32
    return %c0_i32, %c0_i32_0 : i32, i32
  }
  func.func @transform_6(%arg0: i32) -> (i32, i32) {
    %c0_i32 = arith.constant 0 : i32
    %c0_i32_0 = arith.constant 0 : i32
    return %arg0, %c0_i32 : i32, i32
  }
}

</mosaic_0001>

<llo_original>
// kernel: tpu_custom_call.1
$region0: #{tpu_custom_call.1}
  #allocation0 [shape = 'u32[]', space=smem, size = 0x4, offset = 0x4, fixed_abs, tag = 'smem constant byte address 0x4 - core index']
  #allocation1 [shape = 'u32[72,128]{1,0:T(1,128)}', space=vmem, size = 0x9000, scoped, tag = 'internal scratch']
  %s0 = inlined_call_operand.hbm [shape: f32[16,8,64], index: 0, kind: input, shape index: {}]
  %s1 = inlined_call_operand.vmem [shape: f32[16,32], index: 1, kind: input, shape index: {}]
  %s2 = inlined_call_operand.vmem [shape: s32[16,8], index: 2, kind: input, shape index: {}]
  %s3 = inlined_call_operand.vmem [shape: f32[64,32], index: 3, kind: input, shape index: {}]
  %s4 = inlined_call_operand.vmem [shape: f32[32,32], index: 4, kind: input, shape index: {}]
  %s5 = inlined_call_operand.vmem [shape: f32[4,32], index: 5, kind: input, shape index: {}]
  %s6 = inlined_call_operand.hbm [shape: f32[16,32], index: 6, kind: output, shape index: {}]
  %s7 = sld [smem:[#allocation0]]
  $region38: #{tpu_custom_call.1} parent=0
    _
  %s9 = ssub.s32 1, %s7
  %s10 = scalar_select 0, %s9, %s7
  $region1: #{tpu_custom_call.1} parent=0
    #allocation2 [shape = 'u8[65536]{0}', space=vmem, size = 0x10000, scoped, tag = 'input window, operand 0, single buffered']
    #allocation3 [shape = 's32[1]{0}', space=sflag, size = 0x4, scoped, tag = 'scoped memory for tpu_custom_call.1']
    #allocation4 [shape = 's32[1]{0}', space=sflag, size = 0x4, scoped, tag = 'scoped memory for tpu_custom_call.1']
    #allocation5 [shape = 'u8[8192]{0}', space=vmem, size = 0x2000, scoped, tag = 'output window, operand 0, single buffered']
    %11 = vsyncpa [#allocation3], 0
    %12 = vsyncpa [#allocation4], 0
    // Predicated region
    $region2: #{tpu_custom_call.1} parent=1 // pred_check
      _
    $region3: #{tpu_custom_call.1} parent=1 // pred_check_branch
      %14 = sbr.rel (0) target = $region5
    $region4: #{tpu_custom_call.1} parent=1 // pred_region
      %16 = vsyncadd [#allocation3], 0
      %s17 = sshll.u32 %s0, 4
      %s18 = int_to_ptr.hbm [resolvable:$true] %s17
      %s19 = sshll.u32 [#allocation2], 4
      %s20 = int_to_ptr.vmem [resolvable:$true] %s19
      %25 = dma.hbm_to_vmem [thread:$0]  %s18, 2048, %s20, [#allocation3], 128, 128, 8
    $region5: #{tpu_custom_call.1} parent=1 // pred_fallthru
      _
    // Predicated region
    $region6: #{tpu_custom_call.1} parent=1 // pred_check
      _
    $region7: #{tpu_custom_call.1} parent=1 // pred_check_branch
      %27 = sbr.rel (0) target = $region9
    $region8: #{tpu_custom_call.1} parent=1 // pred_region
      _
    $region9: #{tpu_custom_call.1} parent=1 // pred_fallthru
      _
    // Predicated region
    $region10: #{tpu_custom_call.1} parent=1 // pred_check
      _
    $region11: #{tpu_custom_call.1} parent=1 // pred_check_branch
      %29 = sbr.rel (0) target = $region13
    $region12: #{tpu_custom_call.1} parent=1 // pred_region
      _
    $region13: #{tpu_custom_call.1} parent=1 // pred_fallthru
      _
    // Predicated region
    $region14: #{tpu_custom_call.1} parent=1 // pred_check
      _
    $region15: #{tpu_custom_call.1} parent=1 // pred_check_branch
      %31 = sbr.rel (0) target = $region17
    $region16: #{tpu_custom_call.1} parent=1 // pred_region
      _
    $region17: #{tpu_custom_call.1} parent=1 // pred_fallthru
      _
    // Predicated region
    $region18: #{tpu_custom_call.1} parent=1 // pred_check
      _
    $region19: #{tpu_custom_call.1} parent=1 // pred_check_branch
      %33 = sbr.rel (0) target = $region21
    $region20: #{tpu_custom_call.1} parent=1 // pred_region
      _
    $region21: #{tpu_custom_call.1} parent=1 // pred_fallthru
      _
    // Predicated region
    $region22: #{tpu_custom_call.1} parent=1 // pred_check
      _
    $region23: #{tpu_custom_call.1} parent=1 // pred_check_branch
      %35 = sbr.rel (0) target = $region25
    $region24: #{tpu_custom_call.1} parent=1 // pred_region
      _
    $region25: #{tpu_custom_call.1} parent=1 // pred_fallthru
      _
    // Predicated region
    $region26: #{tpu_custom_call.1} parent=1 // pred_check
      _
    $region27: #{tpu_custom_call.1} parent=1 // pred_check_branch
      %37 = sbr.rel (0) target = $region29
    $region28: #{tpu_custom_call.1} parent=1 // pred_region
      %39 = dma.done [#allocation3], 2048
    $region29: #{tpu_custom_call.1} parent=1 // pred_fallthru
      _
    %v41 = vld [vmem:[%s5] sm:$0xf]
    %v42 = vld [vmem:[#allocation2] sm:$0xff]
    %v43 = vld [vmem:[#allocation2 + $0x8] sm:$0xff]
    %v44 = vld [vmem:[#allocation2 + $0x10] sm:$0xff]
    %v45 = vld [vmem:[#allocation2 + $0x18] sm:$0xff]
    %v46 = vld [vmem:[#allocation2 + $0x20] sm:$0xff]
    %v47 = vld [vmem:[#allocation2 + $0x28] sm:$0xff]
    %v48 = vld [vmem:[#allocation2 + $0x30] sm:$0xff]
    %v49 = vld [vmem:[#allocation2 + $0x38] sm:$0xff]
    %v50 = vld [vmem:[#allocation2 + $0x40] sm:$0xff]
    %v51 = vld [vmem:[#allocation2 + $0x48] sm:$0xff]
    %v52 = vld [vmem:[#allocation2 + $0x50] sm:$0xff]
    %v53 = vld [vmem:[#allocation2 + $0x58] sm:$0xff]
    %v54 = vld [vmem:[#allocation2 + $0x60] sm:$0xff]
    %v55 = vld [vmem:[#allocation2 + $0x68] sm:$0xff]
    %v56 = vld [vmem:[#allocation2 + $0x70] sm:$0xff]
    %v57 = vld [vmem:[#allocation2 + $0x78] sm:$0xff]
    %v58 = vpack.c.bf16 %v43, %v42
    %v59 = vpack.c.bf16 %v45, %v44
    %v60 = vpack.c.bf16 %v47, %v46
    %v61 = vpack.c.bf16 %v49, %v48
    %v62 = vpack.c.bf16 %v51, %v50
    %v63 = vpack.c.bf16 %v53, %v52
    %v64 = vpack.c.bf16 %v55, %v54
    %v65 = vpack.c.bf16 %v57, %v56
    %v66 = vld [vmem:[%s3] sm:$0xff]
    %v67 = vld [vmem:[%s3 + $0x8] sm:$0xff]
    %v68 = vld [vmem:[%s3 + $0x10] sm:$0xff]
    %v69 = vld [vmem:[%s3 + $0x18] sm:$0xff]
    %v70 = vld [vmem:[%s3 + $0x20] sm:$0xff]
    %v71 = vld [vmem:[%s3 + $0x28] sm:$0xff]
    %v72 = vld [vmem:[%s3 + $0x30] sm:$0xff]
    %v73 = vld [vmem:[%s3 + $0x38] sm:$0xff]
    %v74 = vpack.c.bf16 %v67, %v66
    %v75 = vpack.c.bf16 %v69, %v68
    %v76 = vpack.c.bf16 %v71, %v70
    %v77 = vpack.c.bf16 %v73, %v72
    %v78 = vperm.slane %v41, 0
    %vm79 = vcmask 523264
    %v81 = vsel %vm79, %v58, 0
    %v84 = vsel %vm79, %v59, 0
    %v87 = vsel %vm79, %v60, 0
    %v90 = vsel %vm79, %v61, 0
    %v93 = vsel %vm79, %v62, 0
    %v96 = vsel %vm79, %v63, 0
    %v99 = vsel %vm79, %v64, 0
    %v102 = vsel %vm79, %v65, 0
    %104 = vmatpush.bf16.msra.mxu0 0
    %105 = vmatpush.bf16.msra.mxu0 0
    %106 = vmatpush.bf16.msra.mxu0 0
    %107 = vmatpush.bf16.msra.mxu0 0
    %108 = vmatpush.bf16.msra.mxu0 %v77
    %109 = vmatpush.bf16.msra.mxu0 %v76
    %110 = vmatpush.bf16.msra.mxu0 %v75
    %111 = vmatpush.bf16.msra.mxu0 %v74
    %112 = vmatmul.bf16.gmra.mxu0 %v81
    %v113 = vpop.f32.mrf.mxu0
    %v114 = vadd.f32 %v78, %v113
    %v115 = vpop.f32.mrf.mxu0
    %v116 = vadd.f32 %v78, %v115
    %117 = vmatmul.bf16.gmra.mxu0 %v84
    %v118 = vpop.f32.mrf.mxu0
    %v119 = vadd.f32 %v78, %v118
    %v120 = vpop.f32.mrf.mxu0
    %v121 = vadd.f32 %v78, %v120
    %122 = vmatmul.bf16.gmra.mxu0 %v87
    %v123 = vpop.f32.mrf.mxu0
    %v124 = vadd.f32 %v78, %v123
    %v125 = vpop.f32.mrf.mxu0
    %v126 = vadd.f32 %v78, %v125
    %127 = vmatmul.bf16.gmra.mxu0 %v90
    %v128 = vpop.f32.mrf.mxu0
    %v129 = vadd.f32 %v78, %v128
    %v130 = vpop.f32.mrf.mxu0
    %v131 = vadd.f32 %v78, %v130
    %132 = vmatmul.bf16.gmra.mxu0 %v93
    %v133 = vpop.f32.mrf.mxu0
    %v134 = vadd.f32 %v78, %v133
    %v135 = vpop.f32.mrf.mxu0
    %v136 = vadd.f32 %v78, %v135
    %137 = vmatmul.bf16.gmra.mxu0 %v96
    %v138 = vpop.f32.mrf.mxu0
    %v139 = vadd.f32 %v78, %v138
    %v140 = vpop.f32.mrf.mxu0
    %v141 = vadd.f32 %v78, %v140
    %142 = vmatmul.bf16.gmra.mxu0 %v99
    %v143 = vpop.f32.mrf.mxu0
    %v144 = vadd.f32 %v78, %v143
    %v145 = vpop.f32.mrf.mxu0
    %v146 = vadd.f32 %v78, %v145
    %147 = vmatmul.bf16.gmra.mxu0 %v102
    %v148 = vpop.f32.mrf.mxu0
    %v149 = vadd.f32 %v78, %v148
    %v150 = vpop.f32.mrf.mxu0
    %v151 = vadd.f32 %v78, %v150
    %152 = vdwg.mxu0
    %v153 = vld [vmem:[%s1] sm:$0xff]
    %v154 = vld [vmem:[%s1 + $0x8] sm:$0xff]
    %v155 = vpack.c.bf16 %v154, %v153
    %v156 = vld [vmem:[%s4] sm:$0xff]
    %v157 = vld [vmem:[%s4 + $0x8] sm:$0xff]
    %v158 = vld [vmem:[%s4 + $0x10] sm:$0xff]
    %v159 = vld [vmem:[%s4 + $0x18] sm:$0xff]
    %v160 = vpack.c.bf16 %v157, %v156
    %v161 = vpack.c.bf16 %v159, %v158
    %v162 = vperm.slane %v41, 1
    %vm163 = vcmask 261120
    %v165 = vsel %vm163, %v155, 0
    %167 = vmatpush.bf16.msra.mxu0 0
    %168 = vmatpush.bf16.msra.mxu0 0
    %169 = vmatpush.bf16.msra.mxu0 0
    %170 = vmatpush.bf16.msra.mxu0 0
    %171 = vmatpush.bf16.msra.mxu0 0
    %172 = vmatpush.bf16.msra.mxu0 0
    %173 = vmatpush.bf16.msra.mxu0 %v161
    %174 = vmatpush.bf16.msra.mxu0 %v160
    %175 = vmatmul.bf16.gmra.mxu0 %v165
    %v176 = vpop.f32.mrf.mxu0
    %v177 = vadd.f32 %v162, %v176
    %v178 = vpop.f32.mrf.mxu0
    %v179 = vadd.f32 %v162, %v178
    %180 = vdwg.mxu0
    %v183 = vrot.slane %v177, 1
    %v184 = vrot.slane %v177, 2
    %v185 = vrot.slane %v177, 3
    %v186 = vrot.slane %v177, 4
    %v187 = vrot.slane %v177, 5
    %v188 = vrot.slane %v177, 6
    %v189 = vrot.slane %v177, 7
    %v190 = vrot.slane %v179, 1
    %v191 = vrot.slane %v179, 2
    %v192 = vrot.slane %v179, 3
    %v193 = vrot.slane %v179, 4
    %v194 = vrot.slane %v179, 5
    %v195 = vrot.slane %v179, 6
    %v196 = vrot.slane %v179, 7
    %v197 = vperm.slane %v177, 0
    %v198 = vperm.slane %v183, 0
    %v199 = vperm.slane %v184, 0
    %v200 = vperm.slane %v185, 0
    %v201 = vperm.slane %v186, 0
    %v202 = vperm.slane %v187, 0
    %v203 = vperm.slane %v188, 0
    %v204 = vperm.slane %v189, 0
    %v205 = vperm.slane %v179, 0
    %v206 = vperm.slane %v190, 0
    %v207 = vperm.slane %v191, 0
    %v208 = vperm.slane %v192, 0
    %v209 = vperm.slane %v193, 0
    %v210 = vperm.slane %v194, 0
    %v211 = vperm.slane %v195, 0
    %v212 = vperm.slane %v196, 0
    %v229 = vadd.f32 %v114, %v197
    %v230 = vadd.f32 %v116, %v198
    %v231 = vadd.f32 %v119, %v199
    %v232 = vadd.f32 %v121, %v200
    %v233 = vadd.f32 %v124, %v201
    %v234 = vadd.f32 %v126, %v202
    %v235 = vadd.f32 %v129, %v203
    %v236 = vadd.f32 %v131, %v204
    %v237 = vadd.f32 %v134, %v205
    %v238 = vadd.f32 %v136, %v206
    %v239 = vadd.f32 %v139, %v207
    %v240 = vadd.f32 %v141, %v208
    %v241 = vadd.f32 %v144, %v209
    %v242 = vadd.f32 %v146, %v210
    %v243 = vadd.f32 %v149, %v211
    %v244 = vadd.f32 %v151, %v212
    %v245 = vtanh.pop %v229
    %v246 = vtanh.pop %v230
    %v247 = vtanh.pop %v231
    %v248 = vtanh.pop %v232
    %v249 = vtanh.pop %v233
    %v250 = vtanh.pop %v234
    %v251 = vtanh.pop %v235
    %v252 = vtanh.pop %v236
    %v253 = vtanh.pop %v237
    %v254 = vtanh.pop %v238
    %v255 = vtanh.pop %v239
    %v256 = vtanh.pop %v240
    %v257 = vtanh.pop %v241
    %v258 = vtanh.pop %v242
    %v259 = vtanh.pop %v243
    %v260 = vtanh.pop %v244
    %v261 = vperm.slane %v41, 2
    %v262 = vmul.f32 %v245, %v261
    %v263 = vmul.f32 %v246, %v261
    %v264 = vmul.f32 %v247, %v261
    %v265 = vmul.f32 %v248, %v261
    %v266 = vmul.f32 %v249, %v261
    %v267 = vmul.f32 %v250, %v261
    %v268 = vmul.f32 %v251, %v261
    %v269 = vmul.f32 %v252, %v261
    %v270 = vmul.f32 %v253, %v261
    %v271 = vmul.f32 %v254, %v261
    %v272 = vmul.f32 %v255, %v261
    %v273 = vmul.f32 %v256, %v261
    %v274 = vmul.f32 %v257, %v261
    %v275 = vmul.f32 %v258, %v261
    %v276 = vmul.f32 %v259, %v261
    %v277 = vmul.f32 %v260, %v261
    %v278 = vsel %vm163, %v262, 0.0
    %279 = vadd.xlane.f32.xlu0 %v278
    %v280 = vpop.xlane.xlu0 %279
    %v281 = vsel %vm163, %v263, 0.0
    %282 = vadd.xlane.f32.xlu0 %v281
    %v283 = vpop.xlane.xlu0 %282
    %v284 = vsel %vm163, %v264, 0.0
    %285 = vadd.xlane.f32.xlu0 %v284
    %v286 = vpop.xlane.xlu0 %285
    %v287 = vsel %vm163, %v265, 0.0
    %288 = vadd.xlane.f32.xlu0 %v287
    %v289 = vpop.xlane.xlu0 %288
    %v290 = vsel %vm163, %v266, 0.0
    %291 = vadd.xlane.f32.xlu0 %v290
    %v292 = vpop.xlane.xlu0 %291
    %v293 = vsel %vm163, %v267, 0.0
    %294 = vadd.xlane.f32.xlu0 %v293
    %v295 = vpop.xlane.xlu0 %294
    %v296 = vsel %vm163, %v268, 0.0
    %297 = vadd.xlane.f32.xlu0 %v296
    %v298 = vpop.xlane.xlu0 %297
    %v299 = vsel %vm163, %v269, 0.0
    %300 = vadd.xlane.f32.xlu0 %v299
    %v301 = vpop.xlane.xlu0 %300
    %v302 = vsel %vm163, %v270, 0.0
    %303 = vadd.xlane.f32.xlu0 %v302
    %v304 = vpop.xlane.xlu0 %303
    %v305 = vsel %vm163, %v271, 0.0
    %306 = vadd.xlane.f32.xlu0 %v305
    %v307 = vpop.xlane.xlu0 %306
    %v308 = vsel %vm163, %v272, 0.0
    %309 = vadd.xlane.f32.xlu0 %v308
    %v310 = vpop.xlane.xlu0 %309
    %v311 = vsel %vm163, %v273, 0.0
    %312 = vadd.xlane.f32.xlu0 %v311
    %v313 = vpop.xlane.xlu0 %312
    %v314 = vsel %vm163, %v274, 0.0
    %315 = vadd.xlane.f32.xlu0 %v314
    %v316 = vpop.xlane.xlu0 %315
    %v317 = vsel %vm163, %v275, 0.0
    %318 = vadd.xlane.f32.xlu0 %v317
    %v319 = vpop.xlane.xlu0 %318
    %v320 = vsel %vm163, %v276, 0.0
    %321 = vadd.xlane.f32.xlu0 %v320
    %v322 = vpop.xlane.xlu0 %321
    %v323 = vsel %vm163, %v277, 0.0
    %324 = vadd.xlane.f32.xlu0 %v323
    %v325 = vpop.xlane.xlu0 %324
    %v327 = vrot.slane %v41, 3
    %s328 = vtos %v327
    %v329 = vstv %s328
    %v331 = vadd.f32 %v280, %v329
    %v332 = vadd.f32 %v283, %v329
    %v333 = vadd.f32 %v286, %v329
    %v334 = vadd.f32 %v289, %v329
    %v335 = vadd.f32 %v292, %v329
    %v336 = vadd.f32 %v295, %v329
    %v337 = vadd.f32 %v298, %v329
    %v338 = vadd.f32 %v301, %v329
    %v339 = vadd.f32 %v304, %v329
    %v340 = vadd.f32 %v307, %v329
    %v341 = vadd.f32 %v310, %v329
    %v342 = vadd.f32 %v313, %v329
    %v343 = vadd.f32 %v316, %v329
    %v344 = vadd.f32 %v319, %v329
    %v345 = vadd.f32 %v322, %v329
    %v346 = vadd.f32 %v325, %v329
    %v347 = vld [vmem:[%s2] sm:$0xff]
    %v348 = vld [vmem:[%s2 + $0x8] sm:$0xff]
    %vm349 = vcmp.ne.s32.totalorder %v347, 0
    %vm350 = vcmp.ne.s32.totalorder %v348, 0
    %v367 = vlaneseq
    %v368 = vand.u32 %v367, 127
    %v369 = vperm.slane %v331, %v368
    %v370 = vperm.slane %v332, %v368
    %v371 = vperm.slane %v333, %v368
    %v372 = vperm.slane %v334, %v368
    %v373 = vperm.slane %v335, %v368
    %v374 = vperm.slane %v336, %v368
    %v375 = vperm.slane %v337, %v368
    %v376 = vperm.slane %v338, %v368
    %v377 = vperm.slane %v339, %v368
    %v378 = vperm.slane %v340, %v368
    %v379 = vperm.slane %v341, %v368
    %v380 = vperm.slane %v342, %v368
    %v381 = vperm.slane %v343, %v368
    %v382 = vperm.slane %v344, %v368
    %v383 = vperm.slane %v345, %v368
    %v384 = vperm.slane %v346, %v368
    %vm385 = vcmask 1041409
    %v386 = vsel %vm385, %v370, %v369
    %vm387 = vcmask 1042434
    %v388 = vsel %vm387, %v371, %v386
    %vm389 = vcmask 1043459
    %v390 = vsel %vm389, %v372, %v388
    %vm391 = vcmask 1044484
    %v392 = vsel %vm391, %v373, %v390
    %vm393 = vcmask 1045509
    %v394 = vsel %vm393, %v374, %v392
    %vm395 = vcmask 1046534
    %v396 = vsel %vm395, %v375, %v394
    %vm397 = vcmask 1047559
    %v398 = vsel %vm397, %v376, %v396
    %v399 = vsel %vm385, %v378, %v377
    %v400 = vsel %vm387, %v379, %v399
    %v401 = vsel %vm389, %v380, %v400
    %v402 = vsel %vm391, %v381, %v401
    %v403 = vsel %vm393, %v382, %v402
    %v404 = vsel %vm395, %v383, %v403
    %v405 = vsel %vm397, %v384, %v404
    %v408 = vsel %vm349, -inf, %v398
    %v409 = vsel %vm350, -inf, %v405
    %vm410 = vcmask 64512
    %v411 = vsel %vm410, %v408, -inf
    %412 = vmax.xlane.f32.xlu0 %v411
    %v413 = vpop.xlane.xlu0 %412
    %v414 = vsel %vm410, %v409, -inf
    %415 = vmax.xlane.f32.xlu0 %v414
    %v416 = vpop.xlane.xlu0 %415
    %v417 = vsub.f32 %v408, %v413
    %v418 = vsub.f32 %v409, %v416
    %v419 = vmul.f32 %v417, 1.442695
    %v420 = vpow.pop %v419
    %v421 = vmul.f32 %v418, 1.442695
    %v422 = vpow.pop %v421
    %v423 = vsel %vm410, %v420, 0.0
    %424 = vadd.xlane.f32.xlu0 %v423
    %v425 = vpop.xlane.xlu0 %424
    %v426 = vsel %vm410, %v422, 0.0
    %427 = vadd.xlane.f32.xlu0 %v426
    %v428 = vpop.xlane.xlu0 %427
    %v429 = vrcp.pop %v425
    %v430 = vmul.f32 %v425, %v429
    %v431 = vsub.f32 1.0, %v430
    %v432 = vmul.f32 %v429, %v431
    %v433 = vadd.f32 %v429, %v432
    %vm434 = vweird.f32 %v425
    %vm435 = vweird.f32 %v429
    %vm436 = vmor %vm434, %vm435
    %v437 = vsel %vm436, %v429, %v433
    %v438 = vand.u32 2147483647, %v425
    %vm439 = vcmp.eq.f32.partialorder %v438, 8.507059e+37
    %v440 = vand.u32 %v425, 2147483648
    %v441 = vor.u32 1.1754944e-38, %v440
    %v442 = vsel %vm439, %v441, %v437
    %v443 = vmul.f32 %v420, %v442
    %v444 = vrcp.pop %v428
    %v445 = vmul.f32 %v428, %v444
    %v446 = vsub.f32 1.0, %v445
    %v447 = vmul.f32 %v444, %v446
    %v448 = vadd.f32 %v444, %v447
    %vm449 = vweird.f32 %v428
    %vm450 = vweird.f32 %v444
    %vm451 = vmor %vm449, %vm450
    %v452 = vsel %vm451, %v444, %v448
    %v453 = vand.u32 2147483647, %v428
    %vm454 = vcmp.eq.f32.partialorder %v453, 8.507059e+37
    %v455 = vand.u32 %v428, 2147483648
    %v456 = vor.u32 1.1754944e-38, %v455
    %v457 = vsel %vm454, %v456, %v452
    %v458 = vmul.f32 %v422, %v457
    %v459 = vperm.slane %v443, 0
    %v460 = vlaneseq
    %v461 = vshrl.u32 %v460, 7
    %463 = vset.pattern.permute.xlu0 %v461
    %464 = vperm.xlu0 %463, %v459
    %v465 = vpop.permute.xlu0 %464
    %v466 = vperm.slane %v443, 1
    %v467 = vlaneseq
    %v468 = vshrl.u32 %v467, 7
    %470 = vset.pattern.permute.xlu0 %v468
    %471 = vperm.xlu0 %470, %v466
    %v472 = vpop.permute.xlu0 %471
    %v473 = vperm.slane %v443, 2
    %v474 = vlaneseq
    %v475 = vshrl.u32 %v474, 7
    %477 = vset.pattern.permute.xlu0 %v475
    %478 = vperm.xlu0 %477, %v473
    %v479 = vpop.permute.xlu0 %478
    %v480 = vperm.slane %v443, 3
    %v481 = vlaneseq
    %v482 = vshrl.u32 %v481, 7
    %484 = vset.pattern.permute.xlu0 %v482
    %485 = vperm.xlu0 %484, %v480
    %v486 = vpop.permute.xlu0 %485
    %v487 = vperm.slane %v443, 4
    %v488 = vlaneseq
    %v489 = vshrl.u32 %v488, 7
    %491 = vset.pattern.permute.xlu0 %v489
    %492 = vperm.xlu0 %491, %v487
    %v493 = vpop.permute.xlu0 %492
    %v494 = vperm.slane %v443, 5
    %v495 = vlaneseq
    %v496 = vshrl.u32 %v495, 7
    %498 = vset.pattern.permute.xlu0 %v496
    %499 = vperm.xlu0 %498, %v494
    %v500 = vpop.permute.xlu0 %499
    %v501 = vperm.slane %v443, 6
    %v502 = vlaneseq
    %v503 = vshrl.u32 %v502, 7
    %505 = vset.pattern.permute.xlu0 %v503
    %506 = vperm.xlu0 %505, %v501
    %v507 = vpop.permute.xlu0 %506
    %v508 = vperm.slane %v443, 7
    %v509 = vlaneseq
    %v510 = vshrl.u32 %v509, 7
    %512 = vset.pattern.permute.xlu0 %v510
    %513 = vperm.xlu0 %512, %v508
    %v514 = vpop.permute.xlu0 %513
    %v515 = vperm.slane %v458, 0
    %v516 = vlaneseq
    %v517 = vshrl.u32 %v516, 7
    %519 = vset.pattern.permute.xlu0 %v517
    %520 = vperm.xlu0 %519, %v515
    %v521 = vpop.permute.xlu0 %520
    %v522 = vperm.slane %v458, 1
    %v523 = vlaneseq
    %v524 = vshrl.u32 %v523, 7
    %526 = vset.pattern.permute.xlu0 %v524
    %527 = vperm.xlu0 %526, %v522
    %v528 = vpop.permute.xlu0 %527
    %v529 = vperm.slane %v458, 2
    %v530 = vlaneseq
    %v531 = vshrl.u32 %v530, 7
    %533 = vset.pattern.permute.xlu0 %v531
    %534 = vperm.xlu0 %533, %v529
    %v535 = vpop.permute.xlu0 %534
    %v536 = vperm.slane %v458, 3
    %v537 = vlaneseq
    %v538 = vshrl.u32 %v537, 7
    %540 = vset.pattern.permute.xlu0 %v538
    %541 = vperm.xlu0 %540, %v536
    %v542 = vpop.permute.xlu0 %541
    %v543 = vperm.slane %v458, 4
    %v544 = vlaneseq
    %v545 = vshrl.u32 %v544, 7
    %547 = vset.pattern.permute.xlu0 %v545
    %548 = vperm.xlu0 %547, %v543
    %v549 = vpop.permute.xlu0 %548
    %v550 = vperm.slane %v458, 5
    %v551 = vlaneseq
    %v552 = vshrl.u32 %v551, 7
    %554 = vset.pattern.permute.xlu0 %v552
    %555 = vperm.xlu0 %554, %v550
    %v556 = vpop.permute.xlu0 %555
    %v557 = vperm.slane %v458, 6
    %v558 = vlaneseq
    %v559 = vshrl.u32 %v558, 7
    %561 = vset.pattern.permute.xlu0 %v559
    %562 = vperm.xlu0 %561, %v557
    %v563 = vpop.permute.xlu0 %562
    %v564 = vperm.slane %v458, 7
    %v565 = vlaneseq
    %v566 = vshrl.u32 %v565, 7
    %568 = vset.pattern.permute.xlu0 %v566
    %569 = vperm.xlu0 %568, %v564
    %v570 = vpop.permute.xlu0 %569
    %v571 = vmul.f32 %v114, %v465
    %v572 = vmul.f32 %v116, %v472
    %v573 = vmul.f32 %v119, %v479
    %v574 = vmul.f32 %v121, %v486
    %v575 = vmul.f32 %v124, %v493
    %v576 = vmul.f32 %v126, %v500
    %v577 = vmul.f32 %v129, %v507
    %v578 = vmul.f32 %v131, %v514
    %v579 = vmul.f32 %v134, %v521
    %v580 = vmul.f32 %v136, %v528
    %v581 = vmul.f32 %v139, %v535
    %v582 = vmul.f32 %v141, %v542
    %v583 = vmul.f32 %v144, %v549
    %v584 = vmul.f32 %v146, %v556
    %v585 = vmul.f32 %v149, %v563
    %v586 = vmul.f32 %v151, %v570
    %v587 = vsel %vm163, %v571, 0.0
    %v588 = vrot.slane %v587, 4
    %v589 = vadd.f32 %v587, %v588
    %v590 = vrot.slane %v589, 2
    %v591 = vadd.f32 %v589, %v590
    %v592 = vrot.slane %v591, 1
    %v593 = vadd.f32 %v591, %v592
    %v594 = vsel %vm163, %v572, 0.0
    %v595 = vrot.slane %v594, 4
    %v596 = vadd.f32 %v594, %v595
    %v597 = vrot.slane %v596, 2
    %v598 = vadd.f32 %v596, %v597
    %v599 = vrot.slane %v598, 1
    %v600 = vadd.f32 %v598, %v599
    %v601 = vsel %vm163, %v573, 0.0
    %v602 = vrot.slane %v601, 4
    %v603 = vadd.f32 %v601, %v602
    %v604 = vrot.slane %v603, 2
    %v605 = vadd.f32 %v603, %v604
    %v606 = vrot.slane %v605, 1
    %v607 = vadd.f32 %v605, %v606
    %v608 = vsel %vm163, %v574, 0.0
    %v609 = vrot.slane %v608, 4
    %v610 = vadd.f32 %v608, %v609
    %v611 = vrot.slane %v610, 2
    %v612 = vadd.f32 %v610, %v611
    %v613 = vrot.slane %v612, 1
    %v614 = vadd.f32 %v612, %v613
    %v615 = vsel %vm163, %v575, 0.0
    %v616 = vrot.slane %v615, 4
    %v617 = vadd.f32 %v615, %v616
    %v618 = vrot.slane %v617, 2
    %v619 = vadd.f32 %v617, %v618
    %v620 = vrot.slane %v619, 1
    %v621 = vadd.f32 %v619, %v620
    %v622 = vsel %vm163, %v576, 0.0
    %v623 = vrot.slane %v622, 4
    %v624 = vadd.f32 %v622, %v623
    %v625 = vrot.slane %v624, 2
    %v626 = vadd.f32 %v624, %v625
    %v627 = vrot.slane %v626, 1
    %v628 = vadd.f32 %v626, %v627
    %v629 = vsel %vm163, %v577, 0.0
    %v630 = vrot.slane %v629, 4
    %v631 = vadd.f32 %v629, %v630
    %v632 = vrot.slane %v631, 2
    %v633 = vadd.f32 %v631, %v632
    %v634 = vrot.slane %v633, 1
    %v635 = vadd.f32 %v633, %v634
    %v636 = vsel %vm163, %v578, 0.0
    %v637 = vrot.slane %v636, 4
    %v638 = vadd.f32 %v636, %v637
    %v639 = vrot.slane %v638, 2
    %v640 = vadd.f32 %v638, %v639
    %v641 = vrot.slane %v640, 1
    %v642 = vadd.f32 %v640, %v641
    %v643 = vsel %vm163, %v579, 0.0
    %v644 = vrot.slane %v643, 4
    %v645 = vadd.f32 %v643, %v644
    %v646 = vrot.slane %v645, 2
    %v647 = vadd.f32 %v645, %v646
    %v648 = vrot.slane %v647, 1
    %v649 = vadd.f32 %v647, %v648
    %v650 = vsel %vm163, %v580, 0.0
    %v651 = vrot.slane %v650, 4
    %v652 = vadd.f32 %v650, %v651
    %v653 = vrot.slane %v652, 2
    %v654 = vadd.f32 %v652, %v653
    %v655 = vrot.slane %v654, 1
    %v656 = vadd.f32 %v654, %v655
    %v657 = vsel %vm163, %v581, 0.0
    %v658 = vrot.slane %v657, 4
    %v659 = vadd.f32 %v657, %v658
    %v660 = vrot.slane %v659, 2
    %v661 = vadd.f32 %v659, %v660
    %v662 = vrot.slane %v661, 1
    %v663 = vadd.f32 %v661, %v662
    %v664 = vsel %vm163, %v582, 0.0
    %v665 = vrot.slane %v664, 4
    %v666 = vadd.f32 %v664, %v665
    %v667 = vrot.slane %v666, 2
    %v668 = vadd.f32 %v666, %v667
    %v669 = vrot.slane %v668, 1
    %v670 = vadd.f32 %v668, %v669
    %v671 = vsel %vm163, %v583, 0.0
    %v672 = vrot.slane %v671, 4
    %v673 = vadd.f32 %v671, %v672
    %v674 = vrot.slane %v673, 2
    %v675 = vadd.f32 %v673, %v674
    %v676 = vrot.slane %v675, 1
    %v677 = vadd.f32 %v675, %v676
    %v678 = vsel %vm163, %v584, 0.0
    %v679 = vrot.slane %v678, 4
    %v680 = vadd.f32 %v678, %v679
    %v681 = vrot.slane %v680, 2
    %v682 = vadd.f32 %v680, %v681
    %v683 = vrot.slane %v682, 1
    %v684 = vadd.f32 %v682, %v683
    %v685 = vsel %vm163, %v585, 0.0
    %v686 = vrot.slane %v685, 4
    %v687 = vadd.f32 %v685, %v686
    %v688 = vrot.slane %v687, 2
    %v689 = vadd.f32 %v687, %v688
    %v690 = vrot.slane %v689, 1
    %v691 = vadd.f32 %v689, %v690
    %v692 = vsel %vm163, %v586, 0.0
    %v693 = vrot.slane %v692, 4
    %v694 = vadd.f32 %v692, %v693
    %v695 = vrot.slane %v694, 2
    %v696 = vadd.f32 %v694, %v695
    %v697 = vrot.slane %v696, 1
    %v698 = vadd.f32 %v696, %v697
    %v715 = vsel %vm385, %v600, %v593
    %v716 = vsel %vm387, %v607, %v715
    %v717 = vsel %vm389, %v614, %v716
    %v718 = vsel %vm391, %v621, %v717
    %v719 = vsel %vm393, %v628, %v718
    %v720 = vsel %vm395, %v635, %v719
    %v721 = vsel %vm397, %v642, %v720
    %v722 = vsel %vm385, %v656, %v649
    %v723 = vsel %vm387, %v663, %v722
    %v724 = vsel %vm389, %v670, %v723
    %v725 = vsel %vm391, %v677, %v724
    %v726 = vsel %vm393, %v684, %v725
    %v727 = vsel %vm395, %v691, %v726
    %v728 = vsel %vm397, %v698, %v727
    %731 = vst.msk [vmem:[#allocation5] sm:$0xff] %vm163, %v721
    %732 = vst.msk [vmem:[#allocation5 + $0x8] sm:$0xff] %vm163, %v728
    // Predicated region
    $region30: #{tpu_custom_call.1} parent=1 // pred_check
      _
    $region31: #{tpu_custom_call.1} parent=1 // pred_check_branch
      %734 = sbr.rel (0) target = $region33
    $region32: #{tpu_custom_call.1} parent=1 // pred_region
      %736 = vsyncadd [#allocation4], 0
      %s737 = sshll.u32 [#allocation5], 4
      %s738 = int_to_ptr.vmem [resolvable:$true] %s737
      %s739 = sshll.u32 %s6, 4
      %s740 = int_to_ptr.hbm [resolvable:$true] %s739
      %745 = dma.vmem_to_hbm [thread:$0]  %s738, 256, %s740, [#allocation4], 128, 128, 8
    $region33: #{tpu_custom_call.1} parent=1 // pred_fallthru
      _
    // Predicated region
    $region34: #{tpu_custom_call.1} parent=1 // pred_check
      _
    $region35: #{tpu_custom_call.1} parent=1 // pred_check_branch
      %747 = sbr.rel (0) target = $region37
    $region36: #{tpu_custom_call.1} parent=1 // pred_region
      %749 = dma.done [#allocation4], 256
    $region37: #{tpu_custom_call.1} parent=1 // pred_fallthru
      _
    %750 = vsyncpa [#allocation3], 1
    %751 = vsyncpa [#allocation4], 1

</llo_original>
